<compile_context>
chip_gen: v7x
topology: tpu7x:2x2x1
jax: 0.10.0
libtpu: 0.0.40
codegen_flags: <defaults>
</compile_context>

<pallas_src>
import functools

import numpy as np
import jax
import jax.numpy as jnp
from jax.experimental import pallas as pl
from jax.experimental.pallas import tpu as pltpu

_EPS = 1e-5
_KERNEL_SIZE = 11
_SIGMA = 1.5
_PAD = (_KERNEL_SIZE - 1) // 2
_K1 = 0.01
_K2 = 0.03


# ----------------------------------------------------------------------------
# small in-kernel reduction helpers (two single-axis keepdims steps -> (1,1))
# ----------------------------------------------------------------------------
def _sum_all(x):
    return jnp.sum(jnp.sum(x, axis=1, keepdims=True), axis=0, keepdims=True)


def _max_all(x):
    return jnp.max(jnp.max(x, axis=1, keepdims=True), axis=0, keepdims=True)


def _min_all(x):
    return jnp.min(jnp.min(x, axis=1, keepdims=True), axis=0, keepdims=True)


# ----------------------------------------------------------------------------
# Fused kernel: MRAE sum + SAM cosine map + SSIM masked sum, one grid step.
# ----------------------------------------------------------------------------
def _loss_kernel(pred_x_ref, target_x_ref, bh_ref, bw_ref, csum_ref, mask_ref,
                 scal_ref, cos_ref, mom_sc, *, h, n_groups, gw, split_h):
    f32 = jnp.float32

    # (H, B*W) lane-dense "image columns" view; eps added exactly as in forward()
    p = pred_x_ref[...] + _EPS
    t = target_x_ref[...] + _EPS

    # ---------------- MRAE: sum |p - t| / t, finished to a (1,1) scalar ------
    mrae_sum = _sum_all(jnp.abs(p - t) / t)

    # ---------------- SSIM constants ------------------------------------------
    # data_range = max(max-min) over pred / target (the +eps shift cancels).
    dr = jnp.maximum(_max_all(p) - _min_all(p), _max_all(t) - _min_all(t))  # (1,1)
    c1 = (_K1 * dr) ** 2
    c2 = (_K2 * dr) ** 2

    # ---------------- moment slab in VMEM scratch (no concatenate copy) -------
    mom_sc[0 * h:1 * h, :] = p
    mom_sc[1 * h:2 * h, :] = t
    mom_sc[2 * h:3 * h, :] = p * p
    mom_sc[3 * h:4 * h, :] = t * t
    mom_sc[4 * h:5 * h, :] = p * t

    # ---------------- SAM: per-pixel clamped spectral cosine ------------------
    # Channel sums of (p*p, t*t, p*t) for every pixel with ONE small MXU matmul
    # against the constant channel-summing block matrix (B*W, N*W).
    cs = jnp.dot(mom_sc[2 * h:5 * h, :], csum_ref[...],
                 preferred_element_type=f32)                  # (3H, N*W)
    pn2 = cs[0 * h:1 * h, :]
    tn2 = cs[1 * h:2 * h, :]
    dot = cs[2 * h:3 * h, :]
    # arccos has no Mosaic lowering (and its atan2/asin decompositions don't
    # lower either), so only the clamped cosine map leaves the kernel.
    cos_ref[...] = jnp.clip(dot / jnp.sqrt(pn2 * tn2), -1.0, 1.0)

    # ---------------- SSIM: separable 11x11 gaussian blur on the MXU ----------
    # Reflect padding is folded into bh / bw.  The W-blur is applied per column
    # group (G images per group) so the right operand stays O((G*W)^2), not
    # O((B*W)^2).  At the module shapes n_groups == 1 (single dense matmul).
    if split_h:
        # Large H: five per-map A_H matmuls (bh_ref is (H, H)).
        for m in range(5):
            ym = jnp.dot(bh_ref[...], mom_sc[m * h:(m + 1) * h, :],
                         preferred_element_type=f32)
            for g in range(n_groups):
                c0 = g * gw
                mom_sc[m * h:(m + 1) * h, c0:c0 + gw] = jnp.dot(
                    ym[:, c0:c0 + gw], bw_ref[...], preferred_element_type=f32)
    else:
        # Small H: packed kron(I_5, A_H) fills the MXU tile (bh_ref is (5H, 5H)).
        y = jnp.dot(bh_ref[...], mom_sc[...], preferred_element_type=f32)
        for g in range(n_groups):
            c0 = g * gw
            mom_sc[:, c0:c0 + gw] = jnp.dot(
                y[:, c0:c0 + gw], bw_ref[...], preferred_element_type=f32)

    mu_p = mom_sc[0 * h:1 * h, :]
    mu_t = mom_sc[1 * h:2 * h, :]
    e_pp = mom_sc[2 * h:3 * h, :]
    e_tt = mom_sc[3 * h:4 * h, :]
    e_pt = mom_sc[4 * h:5 * h, :]

    mu_pp = mu_p * mu_p
    mu_tt = mu_t * mu_t
    mu_pt = mu_p * mu_t
    num = (2.0 * mu_pt + c1) * (2.0 * (e_pt - mu_pt) + c2)
    den = (mu_pp + mu_tt + c1) * ((e_pp - mu_pp) + (e_tt - mu_tt) + c2)
    # Interior (border-cropped) sum of the SSIM map, finished in-kernel.
    ssim_sum = _sum_all((num / den) * mask_ref[...])

    # ---------------- single lane-padded scalar output ------------------------
    lane = jax.lax.broadcasted_iota(jnp.int32, (1, 128), 1)
    scal_ref[...] = jnp.where(lane == 0, mrae_sum,
                              jnp.where(lane == 1, ssim_sum, 0.0))


# ----------------------------------------------------------------------------
# Deterministic host-side "parameters": gaussian blur folded (with reflect
# padding) into band matrices so the 11x11 separable conv runs on the MXU.
# ----------------------------------------------------------------------------
def _gaussian_1d(kernel_size=_KERNEL_SIZE, sigma=_SIGMA):
    dist = np.arange(kernel_size, dtype=np.float64) - (kernel_size - 1) / 2.0
    g = np.exp(-((dist / sigma) ** 2) / 2.0)
    return (g / g.sum()).astype(np.float32)


def _blur_matrix(size, kernel_size=_KERNEL_SIZE, sigma=_SIGMA):
    """(size, size) matrix M with  M @ v == reflect-padded gaussian blur of v."""
    pad = (kernel_size - 1) // 2
    g = _gaussian_1d(kernel_size, sigma)
    K = np.zeros((size + 2 * pad, size), dtype=np.float32)     # K[r, h] = g[r-h]
    for h in range(size):
        K[h:h + kernel_size, h] = g
    R = np.zeros((size + 2 * pad, size), dtype=np.float32)     # reflect-pad matrix
    for j in range(size + 2 * pad):
        i = j - pad
        if i < 0:
            i = -i
        elif i >= size:
            i = 2 * (size - 1) - i
        R[j, i] = 1.0
    return (K.T @ R).astype(np.float32)                         # (size, size)


def _interior_mask(H, W, B, pad):
    """(H, B*W) mask selecting the pad-cropped interior of every image block."""
    ih = ((np.arange(H) >= pad) & (np.arange(H) < H - pad)).astype(np.float32)
    iw = ((np.arange(W) >= pad) & (np.arange(W) < W - pad)).astype(np.float32)
    return np.outer(ih, np.tile(iw, B)).astype(np.float32)


def _channel_sum_matrix(N, C, W):
    """(N*C*W, N*W) 0/1 matrix: right-multiplying the (H, B*W) slab sums channels."""
    S = np.zeros((N * C * W, N * W), dtype=np.float32)
    rows = np.arange(N * C * W)
    w = rows % W
    n = rows // (C * W)
    S[rows, n * W + w] = 1.0
    return S


def _pick_group(B, W, lane_target=256, max_gw=1024):
    """Images per W-blur column group: >= lane_target lanes when possible,
    operand capped at (max_gw)^2, and G must divide B."""
    best = 1
    for g in range(1, B + 1):
        if B % g:
            continue
        if g * W > max(max_gw, W):
            break
        best = g
        if g * W >= lane_target:
            break
    return best


# ----------------------------------------------------------------------------
# Wrapper
# ----------------------------------------------------------------------------
def mrae_ssim_sam_loss(pred, target,
                       enable_mrae=True, enable_sam=True, enable_ssim=True):
    assert int(enable_mrae) + int(enable_sam) + int(enable_ssim) > 0
    N, C, H, W = pred.shape
    B = N * C
    f32 = jnp.float32
    pred = pred.astype(f32)
    target = target.astype(f32)

    # Single lane-dense layout: (H, B*W) "image columns" slab (rows = h,
    # cols = (image, w)).  Everything (MRAE, SAM channel sums, SSIM blur) is
    # computed from it, so only one transpose per tensor remains in the wrapper.
    pred_x = jnp.transpose(pred.reshape(B, H, W), (1, 0, 2)).reshape(H, B * W)
    target_x = jnp.transpose(target.reshape(B, H, W), (1, 0, 2)).reshape(H, B * W)

    # Separable gaussian blur (reflect padding folded in).
    a_h = _blur_matrix(H)                                             # (H, H)
    a_w = _blur_matrix(W)                                             # (W, W)
    split_h = (5 * H) > 512
    bh = a_h if split_h else np.kron(np.eye(5, dtype=np.float32), a_h)
    bh_dim = H if split_h else 5 * H

    G = _pick_group(B, W)                                             # images / group
    gw = G * W
    n_groups = B // G
    bw = np.kron(np.eye(G, dtype=np.float32), a_w.T)                  # (G*W, G*W)

    csum = _channel_sum_matrix(N, C, W)                               # (B*W, N*W)
    mask = _interior_mask(H, W, B, _PAD)                              # (H, B*W)

    # Advisory cost estimate (MXU flops + input/output bytes + EUP sqrt count).
    flops = int(
        2 * (3 * H) * (B * W) * (N * W)                               # SAM chan-sum
        + (2 * 5 * H * H * (B * W) if split_h
           else 2 * (5 * H) * (5 * H) * (B * W))                      # H blur
        + n_groups * 2 * (5 * H) * gw * gw                            # W blur
        + 40 * H * B * W)                                             # elementwise
    bytes_acc = int(4 * (2 * H * B * W + bh.size + bw.size + csum.size
                         + mask.size + 128 + H * N * W))
    trans = int(H * N * W)

    kernel = functools.partial(_loss_kernel, h=H, n_groups=n_groups, gw=gw,
                               split_h=split_h)
    scal, cos = pl.pallas_call(
        kernel,
        grid=(1,),
        in_specs=[
            pl.BlockSpec((H, B * W), lambda i: (0, 0)),
            pl.BlockSpec((H, B * W), lambda i: (0, 0)),
            pl.BlockSpec((bh_dim, bh_dim), lambda i: (0, 0)),
            pl.BlockSpec((gw, gw), lambda i: (0, 0)),
            pl.BlockSpec((B * W, N * W), lambda i: (0, 0)),
            pl.BlockSpec((H, B * W), lambda i: (0, 0)),
        ],
        out_specs=[
            pl.BlockSpec((1, 128), lambda i: (0, 0)),
            pl.BlockSpec((H, N * W), lambda i: (0, 0)),
        ],
        out_shape=[
            jax.ShapeDtypeStruct((1, 128), f32),          # [mrae_sum, ssim_sum, 0...]
            jax.ShapeDtypeStruct((H, N * W), f32),        # clamped spectral cosine
        ],
        scratch_shapes=[pltpu.VMEM((5 * H, B * W), f32)],
        compiler_params=pltpu.CompilerParams(
            dimension_semantics=("arbitrary",)),
        cost_estimate=pl.CostEstimate(flops=flops, transcendentals=trans,
                                      bytes_accessed=bytes_acc),
    )(pred_x, target_x, jnp.asarray(bh), jnp.asarray(bw),
      jnp.asarray(csum), jnp.asarray(mask))

    mrae = scal[0, 0] / (N * C * H * W)
    ssim = scal[0, 1] / (N * C * (H - 2 * _PAD) * (W - 2 * _PAD))
    # arccos has no Mosaic lowering; applied in XLA to the tiny cosine map.
    sam = jnp.mean(jnp.arccos(cos))

    loss = jnp.float32(0.0)
    if enable_mrae:
        loss = loss + mrae
    if enable_sam:
        loss = loss + sam
    if enable_ssim:
        loss = loss + (1.0 - ssim)
    return loss


if __name__ == "__main__":
    key = jax.random.PRNGKey(0)
    kp, kt = jax.random.split(key)
    # Small shapes consistent with the module: batch=2, channels=4, spatial=16x16
    pred = jax.random.uniform(kp, (2, 4, 16, 16), dtype=jnp.float32)
    target = jax.random.uniform(kt, (2, 4, 16, 16), dtype=jnp.float32)

    loss_fn = jax.jit(lambda p, t: mrae_ssim_sam_loss(p, t))
    loss = loss_fn(pred, target)
    jax.block_until_ready(loss)
    print("KERNEL_OK")
</pallas_src>

<mosaic_0001>
module attributes {stable_mosaic.version = 11 : i64} {
  func.func @_loss_kernel(%arg0: i32, %arg1: memref<16x128xf32, #tpu.memory_space<vmem>>, %arg2: memref<16x128xf32, #tpu.memory_space<vmem>>, %arg3: memref<80x80xf32, #tpu.memory_space<vmem>>, %arg4: memref<128x128xf32, #tpu.memory_space<vmem>>, %arg5: memref<128x32xf32, #tpu.memory_space<vmem>>, %arg6: memref<16x128xf32, #tpu.memory_space<vmem>>, %arg7: memref<1x128xf32, #tpu.memory_space<vmem>>, %arg8: memref<16x32xf32, #tpu.memory_space<vmem>>, %arg9: memref<80x128xf32, #tpu.memory_space<vmem>>) attributes {dimension_semantics = [#tpu.dimension_semantics<arbitrary>], iteration_bounds = array<i64: 1>, scalar_prefetch = 0 : i64, scratch_operands = 1 : i64, tpu.core_type = #tpu.core_type<tc>, window_params = [{pipeline_mode = #tpu.pipeline_mode<synchronous>, transform_indices = @transform_0, window_bounds = array<i64: 16, 128>}, {pipeline_mode = #tpu.pipeline_mode<synchronous>, transform_indices = @transform_1, window_bounds = array<i64: 16, 128>}, {pipeline_mode = #tpu.pipeline_mode<synchronous>, transform_indices = @transform_2, window_bounds = array<i64: 80, 80>}, {pipeline_mode = #tpu.pipeline_mode<synchronous>, transform_indices = @transform_3, window_bounds = array<i64: 128, 128>}, {pipeline_mode = #tpu.pipeline_mode<synchronous>, transform_indices = @transform_4, window_bounds = array<i64: 128, 32>}, {pipeline_mode = #tpu.pipeline_mode<synchronous>, transform_indices = @transform_5, window_bounds = array<i64: 16, 128>}, {pipeline_mode = #tpu.pipeline_mode<synchronous>, transform_indices = @transform_6, window_bounds = array<i64: 1, 128>}, {pipeline_mode = #tpu.pipeline_mode<synchronous>, transform_indices = @transform_7, window_bounds = array<i64: 16, 32>}]} {
    %c0 = arith.constant 0 : index
    %c0_0 = arith.constant 0 : index
    %0 = vector.load %arg1[%c0, %c0_0] : memref<16x128xf32, #tpu.memory_space<vmem>>, vector<16x128xf32>
    %cst = arith.constant 9.99999974E-6 : f32
    %1 = vector.broadcast %cst : f32 to vector<16x128xf32>
    %2 = arith.addf %0, %1 : vector<16x128xf32>
    %c0_1 = arith.constant 0 : index
    %c0_2 = arith.constant 0 : index
    %3 = vector.load %arg2[%c0_1, %c0_2] : memref<16x128xf32, #tpu.memory_space<vmem>>, vector<16x128xf32>
    %cst_3 = arith.constant 9.99999974E-6 : f32
    %4 = vector.broadcast %cst_3 : f32 to vector<16x128xf32>
    %5 = arith.addf %3, %4 : vector<16x128xf32>
    %6 = arith.subf %2, %5 : vector<16x128xf32>
    %7 = math.absf %6 : vector<16x128xf32>
    %8 = arith.divf %7, %5 : vector<16x128xf32>
    %cst_4 = arith.constant dense<0.000000e+00> : vector<16xf32>
    %9 = vector.multi_reduction <add>, %8, %cst_4 [1] : vector<16x128xf32> to vector<16xf32>
    %10 = vector.shape_cast %9 : vector<16xf32> to vector<16x1xf32>
    %cst_5 = arith.constant dense<0.000000e+00> : vector<1xf32>
    %11 = vector.multi_reduction <add>, %10, %cst_5 [0] : vector<16x1xf32> to vector<1xf32>
    %12 = vector.shape_cast %11 : vector<1xf32> to vector<1x1xf32>
    %cst_6 = arith.constant dense<0xFF800000> : vector<16xf32>
    %13 = vector.multi_reduction <maximumf>, %2, %cst_6 [1] : vector<16x128xf32> to vector<16xf32>
    %14 = vector.shape_cast %13 : vector<16xf32> to vector<16x1xf32>
    %cst_7 = arith.constant dense<0xFF800000> : vector<1xf32>
    %15 = vector.multi_reduction <maximumf>, %14, %cst_7 [0] : vector<16x1xf32> to vector<1xf32>
    %16 = vector.shape_cast %15 : vector<1xf32> to vector<1x1xf32>
    %cst_8 = arith.constant dense<0x7F800000> : vector<16xf32>
    %17 = vector.multi_reduction <minimumf>, %2, %cst_8 [1] : vector<16x128xf32> to vector<16xf32>
    %18 = vector.shape_cast %17 : vector<16xf32> to vector<16x1xf32>
    %cst_9 = arith.constant dense<0x7F800000> : vector<1xf32>
    %19 = vector.multi_reduction <minimumf>, %18, %cst_9 [0] : vector<16x1xf32> to vector<1xf32>
    %20 = vector.shape_cast %19 : vector<1xf32> to vector<1x1xf32>
    %21 = arith.subf %16, %20 : vector<1x1xf32>
    %cst_10 = arith.constant dense<0xFF800000> : vector<16xf32>
    %22 = vector.multi_reduction <maximumf>, %5, %cst_10 [1] : vector<16x128xf32> to vector<16xf32>
    %23 = vector.shape_cast %22 : vector<16xf32> to vector<16x1xf32>
    %cst_11 = arith.constant dense<0xFF800000> : vector<1xf32>
    %24 = vector.multi_reduction <maximumf>, %23, %cst_11 [0] : vector<16x1xf32> to vector<1xf32>
    %25 = vector.shape_cast %24 : vector<1xf32> to vector<1x1xf32>
    %cst_12 = arith.constant dense<0x7F800000> : vector<16xf32>
    %26 = vector.multi_reduction <minimumf>, %5, %cst_12 [1] : vector<16x128xf32> to vector<16xf32>
    %27 = vector.shape_cast %26 : vector<16xf32> to vector<16x1xf32>
    %cst_13 = arith.constant dense<0x7F800000> : vector<1xf32>
    %28 = vector.multi_reduction <minimumf>, %27, %cst_13 [0] : vector<16x1xf32> to vector<1xf32>
    %29 = vector.shape_cast %28 : vector<1xf32> to vector<1x1xf32>
    %30 = arith.subf %25, %29 : vector<1x1xf32>
    %31 = arith.maximumf %21, %30 : vector<1x1xf32>
    %cst_14 = arith.constant 0.00999999977 : f32
    %32 = vector.broadcast %cst_14 : f32 to vector<1x1xf32>
    %33 = arith.mulf %32, %31 : vector<1x1xf32>
    %34 = arith.mulf %33, %33 : vector<1x1xf32>
    %cst_15 = arith.constant 3.000000e-02 : f32
    %35 = vector.broadcast %cst_15 : f32 to vector<1x1xf32>
    %36 = arith.mulf %35, %31 : vector<1x1xf32>
    %37 = arith.mulf %36, %36 : vector<1x1xf32>
    %c0_16 = arith.constant 0 : index
    %c0_17 = arith.constant 0 : index
    %38 = vector.load %arg9[%c0_16, %c0_17] : memref<80x128xf32, #tpu.memory_space<vmem>>, vector<16x128xf32>
    tpu.vector_store %arg9[%c0_16, %c0_17], %2 {strides = array<i32>} : memref<80x128xf32, #tpu.memory_space<vmem>>, vector<16x128xf32>,
    %c16 = arith.constant 16 : index
    %c0_18 = arith.constant 0 : index
    %39 = vector.load %arg9[%c16, %c0_18] : memref<80x128xf32, #tpu.memory_space<vmem>>, vector<16x128xf32>
    tpu.vector_store %arg9[%c16, %c0_18], %5 {strides = array<i32>} : memref<80x128xf32, #tpu.memory_space<vmem>>, vector<16x128xf32>,
    %40 = arith.mulf %2, %2 : vector<16x128xf32>
    %c32 = arith.constant 32 : index
    %c0_19 = arith.constant 0 : index
    %41 = vector.load %arg9[%c32, %c0_19] : memref<80x128xf32, #tpu.memory_space<vmem>>, vector<16x128xf32>
    tpu.vector_store %arg9[%c32, %c0_19], %40 {strides = array<i32>} : memref<80x128xf32, #tpu.memory_space<vmem>>, vector<16x128xf32>,
    %42 = arith.mulf %5, %5 : vector<16x128xf32>
    %c48 = arith.constant 48 : index
    %c0_20 = arith.constant 0 : index
    %43 = vector.load %arg9[%c48, %c0_20] : memref<80x128xf32, #tpu.memory_space<vmem>>, vector<16x128xf32>
    tpu.vector_store %arg9[%c48, %c0_20], %42 {strides = array<i32>} : memref<80x128xf32, #tpu.memory_space<vmem>>, vector<16x128xf32>,
    %44 = arith.mulf %2, %5 : vector<16x128xf32>
    %c64 = arith.constant 64 : index
    %c0_21 = arith.constant 0 : index
    %45 = vector.load %arg9[%c64, %c0_21] : memref<80x128xf32, #tpu.memory_space<vmem>>, vector<16x128xf32>
    tpu.vector_store %arg9[%c64, %c0_21], %44 {strides = array<i32>} : memref<80x128xf32, #tpu.memory_space<vmem>>, vector<16x128xf32>,
    %c32_22 = arith.constant 32 : index
    %c0_23 = arith.constant 0 : index
    %46 = vector.load %arg9[%c32_22, %c0_23] : memref<80x128xf32, #tpu.memory_space<vmem>>, vector<48x128xf32>
    %c0_24 = arith.constant 0 : index
    %c0_25 = arith.constant 0 : index
    %47 = vector.load %arg5[%c0_24, %c0_25] : memref<128x32xf32, #tpu.memory_space<vmem>>, vector<128x32xf32>
    %cst_26 = arith.constant dense<0.000000e+00> : vector<48x32xf32>
    %48 = tpu.matmul %46, %47, %cst_26 {dimension_numbers = #tpu.dot_dimension_numbers<[1], [0], [0], [1], [0, 0, 1, 1], [], []>} : vector<48x128xf32>, vector<128x32xf32>, vector<48x32xf32> -> vector<48x32xf32>
    %49 = vector.extract_strided_slice %48 {offsets = [0, 0], sizes = [16, 32], strides = [1, 1]} : vector<48x32xf32> to vector<16x32xf32>
    %50 = vector.extract_strided_slice %48 {offsets = [16, 0], sizes = [16, 32], strides = [1, 1]} : vector<48x32xf32> to vector<16x32xf32>
    %51 = vector.extract_strided_slice %48 {offsets = [32, 0], sizes = [16, 32], strides = [1, 1]} : vector<48x32xf32> to vector<16x32xf32>
    %52 = arith.mulf %49, %50 : vector<16x32xf32>
    %53 = math.sqrt %52 : vector<16x32xf32>
    %54 = arith.divf %51, %53 : vector<16x32xf32>
    %cst_27 = arith.constant -1.000000e+00 : f32
    %cst_28 = arith.constant 1.000000e+00 : f32
    %55 = vector.broadcast %cst_27 : f32 to vector<16x32xf32>
    %56 = arith.maximumf %55, %54 : vector<16x32xf32>
    %57 = vector.broadcast %cst_28 : f32 to vector<16x32xf32>
    %58 = arith.minimumf %57, %56 : vector<16x32xf32>
    %c0_29 = arith.constant 0 : index
    %c0_30 = arith.constant 0 : index
    %59 = vector.load %arg8[%c0_29, %c0_30] : memref<16x32xf32, #tpu.memory_space<vmem>>, vector<16x32xf32>
    tpu.vector_store %arg8[%c0_29, %c0_30], %58 {strides = array<i32>} : memref<16x32xf32, #tpu.memory_space<vmem>>, vector<16x32xf32>,
    %c0_31 = arith.constant 0 : index
    %c0_32 = arith.constant 0 : index
    %60 = vector.load %arg3[%c0_31, %c0_32] : memref<80x80xf32, #tpu.memory_space<vmem>>, vector<80x80xf32>
    %c0_33 = arith.constant 0 : index
    %c0_34 = arith.constant 0 : index
    %61 = vector.load %arg9[%c0_33, %c0_34] : memref<80x128xf32, #tpu.memory_space<vmem>>, vector<80x128xf32>
    %cst_35 = arith.constant dense<0.000000e+00> : vector<80x128xf32>
    %62 = tpu.matmul %60, %61, %cst_35 {dimension_numbers = #tpu.dot_dimension_numbers<[1], [0], [0], [1], [0, 0, 1, 1], [], []>} : vector<80x80xf32>, vector<80x128xf32>, vector<80x128xf32> -> vector<80x128xf32>
    %c0_36 = arith.constant 0 : index
    %c0_37 = arith.constant 0 : index
    %63 = vector.load %arg4[%c0_36, %c0_37] : memref<128x128xf32, #tpu.memory_space<vmem>>, vector<128x128xf32>
    %cst_38 = arith.constant dense<0.000000e+00> : vector<80x128xf32>
    %64 = tpu.matmul %62, %63, %cst_38 {dimension_numbers = #tpu.dot_dimension_numbers<[1], [0], [0], [1], [0, 0, 1, 1], [], []>} : vector<80x128xf32>, vector<128x128xf32>, vector<80x128xf32> -> vector<80x128xf32>
    %c0_39 = arith.constant 0 : index
    %c0_40 = arith.constant 0 : index
    %65 = vector.load %arg9[%c0_39, %c0_40] : memref<80x128xf32, #tpu.memory_space<vmem>>, vector<80x128xf32>
    tpu.vector_store %arg9[%c0_39, %c0_40], %64 {strides = array<i32>} : memref<80x128xf32, #tpu.memory_space<vmem>>, vector<80x128xf32>,
    %c0_41 = arith.constant 0 : index
    %c0_42 = arith.constant 0 : index
    %66 = vector.load %arg9[%c0_41, %c0_42] : memref<80x128xf32, #tpu.memory_space<vmem>>, vector<16x128xf32>
    %c16_43 = arith.constant 16 : index
    %c0_44 = arith.constant 0 : index
    %67 = vector.load %arg9[%c16_43, %c0_44] : memref<80x128xf32, #tpu.memory_space<vmem>>, vector<16x128xf32>
    %c32_45 = arith.constant 32 : index
    %c0_46 = arith.constant 0 : index
    %68 = vector.load %arg9[%c32_45, %c0_46] : memref<80x128xf32, #tpu.memory_space<vmem>>, vector<16x128xf32>
    %c48_47 = arith.constant 48 : index
    %c0_48 = arith.constant 0 : index
    %69 = vector.load %arg9[%c48_47, %c0_48] : memref<80x128xf32, #tpu.memory_space<vmem>>, vector<16x128xf32>
    %c64_49 = arith.constant 64 : index
    %c0_50 = arith.constant 0 : index
    %70 = vector.load %arg9[%c64_49, %c0_50] : memref<80x128xf32, #tpu.memory_space<vmem>>, vector<16x128xf32>
    %71 = arith.mulf %66, %66 : vector<16x128xf32>
    %72 = arith.mulf %67, %67 : vector<16x128xf32>
    %73 = arith.mulf %66, %67 : vector<16x128xf32>
    %cst_51 = arith.constant 2.000000e+00 : f32
    %74 = vector.broadcast %cst_51 : f32 to vector<16x128xf32>
    %75 = arith.mulf %74, %73 : vector<16x128xf32>
    %76 = vector.broadcast %34 : vector<1x1xf32> to vector<16x128xf32>
    %77 = arith.addf %75, %76 : vector<16x128xf32>
    %78 = arith.subf %70, %73 : vector<16x128xf32>
    %cst_52 = arith.constant 2.000000e+00 : f32
    %79 = vector.broadcast %cst_52 : f32 to vector<16x128xf32>
    %80 = arith.mulf %79, %78 : vector<16x128xf32>
    %81 = vector.broadcast %37 : vector<1x1xf32> to vector<16x128xf32>
    %82 = arith.addf %80, %81 : vector<16x128xf32>
    %83 = arith.mulf %77, %82 : vector<16x128xf32>
    %84 = arith.addf %71, %72 : vector<16x128xf32>
    %85 = vector.broadcast %34 : vector<1x1xf32> to vector<16x128xf32>
    %86 = arith.addf %84, %85 : vector<16x128xf32>
    %87 = arith.subf %68, %71 : vector<16x128xf32>
    %88 = arith.subf %69, %72 : vector<16x128xf32>
    %89 = arith.addf %87, %88 : vector<16x128xf32>
    %90 = vector.broadcast %37 : vector<1x1xf32> to vector<16x128xf32>
    %91 = arith.addf %89, %90 : vector<16x128xf32>
    %92 = arith.mulf %86, %91 : vector<16x128xf32>
    %93 = arith.divf %83, %92 : vector<16x128xf32>
    %c0_53 = arith.constant 0 : index
    %c0_54 = arith.constant 0 : index
    %94 = vector.load %arg6[%c0_53, %c0_54] : memref<16x128xf32, #tpu.memory_space<vmem>>, vector<16x128xf32>
    %95 = arith.mulf %93, %94 : vector<16x128xf32>
    %cst_55 = arith.constant dense<0.000000e+00> : vector<16xf32>
    %96 = vector.multi_reduction <add>, %95, %cst_55 [1] : vector<16x128xf32> to vector<16xf32>
    %97 = vector.shape_cast %96 : vector<16xf32> to vector<16x1xf32>
    %cst_56 = arith.constant dense<0.000000e+00> : vector<1xf32>
    %98 = vector.multi_reduction <add>, %97, %cst_56 [0] : vector<16x1xf32> to vector<1xf32>
    %99 = vector.shape_cast %98 : vector<1xf32> to vector<1x1xf32>
    %100 = tpu.iota {dimensions = array<i32: 1>} : vector<1x128xi32>
    %c0_i32 = arith.constant 0 : i32
    %101 = vector.broadcast %c0_i32 : i32 to vector<1x128xi32>
    %102 = arith.cmpi eq, %100, %101 : vector<1x128xi32>
    %c1_i32 = arith.constant 1 : i32
    %103 = vector.broadcast %c1_i32 : i32 to vector<1x128xi32>
    %104 = arith.cmpi eq, %100, %103 : vector<1x128xi32>
    %cst_57 = arith.constant 0.000000e+00 : f32
    %105 = vector.shape_cast %99 : vector<1x1xf32> to vector<1x1xf32>
    %106 = vector.broadcast %105 : vector<1x1xf32> to vector<1x128xf32>
    %107 = vector.broadcast %cst_57 : f32 to vector<1x128xf32>
    %108 = arith.select %104, %106, %107 : vector<1x128xi1>, vector<1x128xf32>
    %109 = vector.shape_cast %12 : vector<1x1xf32> to vector<1x1xf32>
    %110 = vector.broadcast %109 : vector<1x1xf32> to vector<1x128xf32>
    %111 = arith.select %102, %110, %108 : vector<1x128xi1>, vector<1x128xf32>
    %c0_58 = arith.constant 0 : index
    %c0_59 = arith.constant 0 : index
    %112 = vector.load %arg7[%c0_58, %c0_59] : memref<1x128xf32, #tpu.memory_space<vmem>>, vector<1x128xf32>
    tpu.vector_store %arg7[%c0_58, %c0_59], %111 {strides = array<i32>} : memref<1x128xf32, #tpu.memory_space<vmem>>, vector<1x128xf32>,
    return
  }
  func.func @transform_0(%arg0: i32) -> (i32, i32) {
    %c0_i32 = arith.constant 0 : i32
    %c0_i32_0 = arith.constant 0 : i32
    %c0_i32_1 = arith.constant 0 : i32
    return %c0_i32, %c0_i32_0 : i32, i32
  }
  func.func @transform_1(%arg0: i32) -> (i32, i32) {
    %c0_i32 = arith.constant 0 : i32
    %c0_i32_0 = arith.constant 0 : i32
    %c0_i32_1 = arith.constant 0 : i32
    return %c0_i32, %c0_i32_0 : i32, i32
  }
  func.func @transform_2(%arg0: i32) -> (i32, i32) {
    %c0_i32 = arith.constant 0 : i32
    %c0_i32_0 = arith.constant 0 : i32
    %c0_i32_1 = arith.constant 0 : i32
    return %c0_i32, %c0_i32_0 : i32, i32
  }
  func.func @transform_3(%arg0: i32) -> (i32, i32) {
    %c0_i32 = arith.constant 0 : i32
    %c0_i32_0 = arith.constant 0 : i32
    %c0_i32_1 = arith.constant 0 : i32
    return %c0_i32, %c0_i32_0 : i32, i32
  }
  func.func @transform_4(%arg0: i32) -> (i32, i32) {
    %c0_i32 = arith.constant 0 : i32
    %c0_i32_0 = arith.constant 0 : i32
    %c0_i32_1 = arith.constant 0 : i32
    return %c0_i32, %c0_i32_0 : i32, i32
  }
  func.func @transform_5(%arg0: i32) -> (i32, i32) {
    %c0_i32 = arith.constant 0 : i32
    %c0_i32_0 = arith.constant 0 : i32
    %c0_i32_1 = arith.constant 0 : i32
    return %c0_i32, %c0_i32_0 : i32, i32
  }
  func.func @transform_6(%arg0: i32) -> (i32, i32) {
    %c0_i32 = arith.constant 0 : i32
    %c0_i32_0 = arith.constant 0 : i32
    %c0_i32_1 = arith.constant 0 : i32
    return %c0_i32, %c0_i32_0 : i32, i32
  }
  func.func @transform_7(%arg0: i32) -> (i32, i32) {
    %c0_i32 = arith.constant 0 : i32
    %c0_i32_0 = arith.constant 0 : i32
    %c0_i32_1 = arith.constant 0 : i32
    return %c0_i32, %c0_i32_0 : i32, i32
  }
}

</mosaic_0001>

<llo_original>
// kernel: _lambda_.1
$region0: #{_lambda_.1}
  #allocation0 [shape = 'u32[]', space=smem, size = 0x4, offset = 0x4, fixed_abs, tag = 'smem constant byte address 0x4 - core index']
  #allocation1 [shape = 'u32[144,128]{1,0:T(1,128)}', space=vmem, size = 0x12000, scoped, tag = 'internal scratch']
  #allocation2 [shape = 'f32[80,128]{1,0:T(8,128)}', space=vmem, size = 0xa000, scoped, tag = 'scratch operand']
  %s0 = inlined_call_operand.vmem [shape: f32[16,128], index: 0, kind: input, shape index: {}]
  %s1 = inlined_call_operand.vmem [shape: f32[16,128], index: 1, kind: input, shape index: {}]
  %s2 = inlined_call_operand.vmem [shape: f32[80,80], index: 2, kind: input, shape index: {}]
  %s3 = inlined_call_operand.vmem [shape: f32[128,128], index: 3, kind: input, shape index: {}]
  %s4 = inlined_call_operand.vmem [shape: f32[128,32], index: 4, kind: input, shape index: {}]
  %s5 = inlined_call_operand.vmem [shape: f32[16,128], index: 5, kind: input, shape index: {}]
  %s6 = inlined_call_operand.vmem [shape: f32[1,128], index: 6, kind: output, shape index: {0}]
  %s7 = inlined_call_operand.vmem [shape: f32[16,32], index: 7, kind: output, shape index: {1}]
  %8 = xla_tuple %s6, %s7
  %s9 = sld [smem:[#allocation0]]
  $region42: #{_lambda_.1} parent=0
    _
  %s11 = ssub.s32 1, %s9
  %s12 = scalar_select 0, %s11, %s9
  // Predicated region
  $region2: #{_lambda_.1} parent=0 // pred_check
    _
  $region3: #{_lambda_.1} parent=0 // pred_check_branch
    %14 = sbr.rel (0) target = $region5
  $region4: #{_lambda_.1} parent=0 // pred_region
    _
  $region5: #{_lambda_.1} parent=0 // pred_fallthru
    _
  // Predicated region
  $region6: #{_lambda_.1} parent=0 // pred_check
    _
  $region7: #{_lambda_.1} parent=0 // pred_check_branch
    %16 = sbr.rel (0) target = $region9
  $region8: #{_lambda_.1} parent=0 // pred_region
    _
  $region9: #{_lambda_.1} parent=0 // pred_fallthru
    _
  // Predicated region
  $region10: #{_lambda_.1} parent=0 // pred_check
    _
  $region11: #{_lambda_.1} parent=0 // pred_check_branch
    %18 = sbr.rel (0) target = $region13
  $region12: #{_lambda_.1} parent=0 // pred_region
    _
  $region13: #{_lambda_.1} parent=0 // pred_fallthru
    _
  // Predicated region
  $region14: #{_lambda_.1} parent=0 // pred_check
    _
  $region15: #{_lambda_.1} parent=0 // pred_check_branch
    %20 = sbr.rel (0) target = $region17
  $region16: #{_lambda_.1} parent=0 // pred_region
    _
  $region17: #{_lambda_.1} parent=0 // pred_fallthru
    _
  // Predicated region
  $region18: #{_lambda_.1} parent=0 // pred_check
    _
  $region19: #{_lambda_.1} parent=0 // pred_check_branch
    %22 = sbr.rel (0) target = $region21
  $region20: #{_lambda_.1} parent=0 // pred_region
    _
  $region21: #{_lambda_.1} parent=0 // pred_fallthru
    _
  // Predicated region
  $region22: #{_lambda_.1} parent=0 // pred_check
    _
  $region23: #{_lambda_.1} parent=0 // pred_check_branch
    %24 = sbr.rel (0) target = $region25
  $region24: #{_lambda_.1} parent=0 // pred_region
    _
  $region25: #{_lambda_.1} parent=0 // pred_fallthru
    _
  %v25 = vld [vmem:[%s0] sm:$0xff]
  %v26 = vld [vmem:[%s0 + $0x8] sm:$0xff]
  %v27 = vadd.f32 %v25, 1e-05
  %v28 = vadd.f32 %v26, 1e-05
  %v29 = vld [vmem:[%s1] sm:$0xff]
  %v30 = vld [vmem:[%s1 + $0x8] sm:$0xff]
  %v31 = vadd.f32 %v29, 1e-05
  %v32 = vadd.f32 %v30, 1e-05
  %v33 = vsub.f32 %v27, %v31
  %v34 = vsub.f32 %v28, %v32
  %v35 = vand.u32 2147483647, %v33
  %v36 = vand.u32 2147483647, %v34
  %v37 = vrcp.pop %v31
  %v38 = vmul.f32 %v35, %v37
  %v39 = vrcp.pop %v32
  %v40 = vmul.f32 %v36, %v39
  %41 = vadd.xlane.f32.xlu0 %v38
  %v42 = vpop.xlane.xlu0 %41
  %43 = vadd.xlane.f32.xlu0 %v40
  %v44 = vpop.xlane.xlu0 %43
  %v45 = vadd.f32 %v42, %v44
  %v46 = vrot.slane %v45, 4
  %v47 = vadd.f32 %v45, %v46
  %v48 = vrot.slane %v47, 2
  %v49 = vadd.f32 %v47, %v48
  %v50 = vrot.slane %v49, 1
  %v51 = vadd.f32 %v49, %v50
  %52 = vmax.xlane.f32.xlu0 %v27
  %v53 = vpop.xlane.xlu0 %52
  %54 = vmax.xlane.f32.xlu0 %v28
  %v55 = vpop.xlane.xlu0 %54
  %v56 = vmax.f32 %v53, %v55
  %v57 = vrot.slane %v56, 4
  %v58 = vmax.f32 %v56, %v57
  %v59 = vrot.slane %v58, 2
  %v60 = vmax.f32 %v58, %v59
  %v61 = vrot.slane %v60, 1
  %v62 = vmax.f32 %v60, %v61
  %63 = vmin.xlane.f32.xlu0 %v27
  %v64 = vpop.xlane.xlu0 %63
  %65 = vmin.xlane.f32.xlu0 %v28
  %v66 = vpop.xlane.xlu0 %65
  %v67 = vmin.f32 %v64, %v66
  %v68 = vrot.slane %v67, 4
  %v69 = vmin.f32 %v67, %v68
  %v70 = vrot.slane %v69, 2
  %v71 = vmin.f32 %v69, %v70
  %v72 = vrot.slane %v71, 1
  %v73 = vmin.f32 %v71, %v72
  %v74 = vsub.f32 %v62, %v73
  %75 = vmax.xlane.f32.xlu0 %v31
  %v76 = vpop.xlane.xlu0 %75
  %77 = vmax.xlane.f32.xlu0 %v32
  %v78 = vpop.xlane.xlu0 %77
  %v79 = vmax.f32 %v76, %v78
  %v80 = vrot.slane %v79, 4
  %v81 = vmax.f32 %v79, %v80
  %v82 = vrot.slane %v81, 2
  %v83 = vmax.f32 %v81, %v82
  %v84 = vrot.slane %v83, 1
  %v85 = vmax.f32 %v83, %v84
  %86 = vmin.xlane.f32.xlu0 %v31
  %v87 = vpop.xlane.xlu0 %86
  %88 = vmin.xlane.f32.xlu0 %v32
  %v89 = vpop.xlane.xlu0 %88
  %v90 = vmin.f32 %v87, %v89
  %v91 = vrot.slane %v90, 4
  %v92 = vmin.f32 %v90, %v91
  %v93 = vrot.slane %v92, 2
  %v94 = vmin.f32 %v92, %v93
  %v95 = vrot.slane %v94, 1
  %v96 = vmin.f32 %v94, %v95
  %v97 = vsub.f32 %v85, %v96
  %v98 = vmax.f32 %v74, %v97
  %v99 = vmul.f32 %v98, 0.01
  %v100 = vmul.f32 %v99, %v99
  %v101 = vmul.f32 %v98, 0.03
  %v102 = vmul.f32 %v101, %v101
  %103 = vst [vmem:[#allocation2] sm:$0xff] %v27
  %104 = vst [vmem:[#allocation2 + $0x8] sm:$0xff] %v28
  %105 = vst [vmem:[#allocation2 + $0x10] sm:$0xff] %v31
  %106 = vst [vmem:[#allocation2 + $0x18] sm:$0xff] %v32
  %v107 = vmul.f32 %v27, %v27
  %v108 = vmul.f32 %v28, %v28
  %109 = vst [vmem:[#allocation2 + $0x20] sm:$0xff] %v107
  %110 = vst [vmem:[#allocation2 + $0x28] sm:$0xff] %v108
  %v111 = vmul.f32 %v31, %v31
  %v112 = vmul.f32 %v32, %v32
  %113 = vst [vmem:[#allocation2 + $0x30] sm:$0xff] %v111
  %114 = vst [vmem:[#allocation2 + $0x38] sm:$0xff] %v112
  %v115 = vmul.f32 %v27, %v31
  %v116 = vmul.f32 %v28, %v32
  %117 = vst [vmem:[#allocation2 + $0x40] sm:$0xff] %v115
  %118 = vst [vmem:[#allocation2 + $0x48] sm:$0xff] %v116
  %v119 = vld [vmem:[#allocation2 + $0x20] sm:$0xff]
  %v120 = vld [vmem:[#allocation2 + $0x28] sm:$0xff]
  %v121 = vld [vmem:[#allocation2 + $0x30] sm:$0xff]
  %v122 = vld [vmem:[#allocation2 + $0x38] sm:$0xff]
  %v123 = vld [vmem:[#allocation2 + $0x40] sm:$0xff]
  %v124 = vld [vmem:[#allocation2 + $0x48] sm:$0xff]
  %v125 = vld [vmem:[%s4] sm:$0xff]
  %v126 = vld [vmem:[%s4 + $0x8] sm:$0xff]
  %v127 = vld [vmem:[%s4 + $0x10] sm:$0xff]
  %v128 = vld [vmem:[%s4 + $0x18] sm:$0xff]
  %v129 = vld [vmem:[%s4 + $0x20] sm:$0xff]
  %v130 = vld [vmem:[%s4 + $0x28] sm:$0xff]
  %v131 = vld [vmem:[%s4 + $0x30] sm:$0xff]
  %v132 = vld [vmem:[%s4 + $0x38] sm:$0xff]
  %v133 = vld [vmem:[%s4 + $0x40] sm:$0xff]
  %v134 = vld [vmem:[%s4 + $0x48] sm:$0xff]
  %v135 = vld [vmem:[%s4 + $0x50] sm:$0xff]
  %v136 = vld [vmem:[%s4 + $0x58] sm:$0xff]
  %v137 = vld [vmem:[%s4 + $0x60] sm:$0xff]
  %v138 = vld [vmem:[%s4 + $0x68] sm:$0xff]
  %v139 = vld [vmem:[%s4 + $0x70] sm:$0xff]
  %v140 = vld [vmem:[%s4 + $0x78] sm:$0xff]
  %141 = vmatprep.subr.mxu0 0.0
  %142 = vmatpush1.msra.mxu0 %v125
  %143 = vmatprep.subr.mxu0 0.0
  %144 = vmatpush1.msra.mxu0 %v126
  %145 = vmatprep.subr.mxu0 0.0
  %146 = vmatpush1.msra.mxu0 %v127
  %147 = vmatprep.subr.mxu0 0.0
  %148 = vmatpush1.msra.mxu0 %v128
  %149 = vmatprep.subr.mxu0 0.0
  %150 = vmatpush1.msra.mxu0 %v129
  %151 = vmatprep.subr.mxu0 0.0
  %152 = vmatpush1.msra.mxu0 %v130
  %153 = vmatprep.subr.mxu0 0.0
  %154 = vmatpush1.msra.mxu0 %v131
  %155 = vmatprep.subr.mxu0 0.0
  %156 = vmatpush1.msra.mxu0 %v132
  %157 = vmatprep.subr.mxu0 0.0
  %158 = vmatpush1.msra.mxu0 %v133
  %159 = vmatprep.subr.mxu0 0.0
  %160 = vmatpush1.msra.mxu0 %v134
  %161 = vmatprep.subr.mxu0 0.0
  %162 = vmatpush1.msra.mxu0 %v135
  %163 = vmatprep.subr.mxu0 0.0
  %164 = vmatpush1.msra.mxu0 %v136
  %165 = vmatprep.subr.mxu0 0.0
  %166 = vmatpush1.msra.mxu0 %v137
  %167 = vmatprep.subr.mxu0 0.0
  %168 = vmatpush1.msra.mxu0 %v138
  %169 = vmatprep.subr.mxu0 0.0
  %170 = vmatpush1.msra.mxu0 %v139
  %171 = vmatprep.subr.mxu0 0.0
  %172 = vmatpush1.msra.mxu0 %v140
  %173 = vmatprep.subr.mxu0 0.0
  %174 = vmatpush1.msra.mxu0 0.0
  %175 = vmatprep.subr.mxu0 0.0
  %176 = vmatpush1.msra.mxu0 0.0
  %177 = vmatprep.subr.mxu0 0.0
  %178 = vmatpush1.msra.mxu0 0.0
  %179 = vmatprep.subr.mxu0 0.0
  %180 = vmatpush1.msra.mxu0 0.0
  %181 = vmatprep.subr.mxu0 0.0
  %182 = vmatpush1.msra.mxu0 0.0
  %183 = vmatprep.subr.mxu0 0.0
  %184 = vmatpush1.msra.mxu0 0.0
  %185 = vmatprep.subr.mxu0 0.0
  %186 = vmatpush1.msra.mxu0 0.0
  %187 = vmatprep.subr.mxu0 0.0
  %188 = vmatpush1.msra.mxu0 0.0
  %189 = vmatprep.subr.mxu0 0.0
  %190 = vmatpush1.msra.mxu0 0.0
  %191 = vmatprep.subr.mxu0 0.0
  %192 = vmatpush1.msra.mxu0 0.0
  %193 = vmatprep.subr.mxu0 0.0
  %194 = vmatpush1.msra.mxu0 0.0
  %195 = vmatprep.subr.mxu0 0.0
  %196 = vmatpush1.msra.mxu0 0.0
  %197 = vmatprep.subr.mxu0 0.0
  %198 = vmatpush1.msra.mxu0 0.0
  %199 = vmatprep.subr.mxu0 0.0
  %200 = vmatpush1.msra.mxu0 0.0
  %201 = vmatprep.subr.mxu0 0.0
  %202 = vmatpush1.msra.mxu0 0.0
  %203 = vmatprep.subr.mxu0 0.0
  %204 = vmatpush1.msra.mxu0 0.0
  %205 = vmatprep.mubr.f32.mxu0 0.0
  %206 = vmatmul.mubr.f32.gmra.mrb[0].mxu0 %v119
  %v207 = vpop.f32.mrb[0].mxu0
  %v208 = vadd.f32 0.0, %v207
  %v209 = vpop.f32.mrb[0].mxu0
  %210 = vmatprep.mubr.f32.mxu0 0.0
  %211 = vmatmul.mubr.f32.gmra.mrb[0].mxu0 %v120
  %v212 = vpop.f32.mrb[0].mxu0
  %v213 = vadd.f32 0.0, %v212
  %v214 = vpop.f32.mrb[0].mxu0
  %215 = vmatprep.mubr.f32.mxu0 0.0
  %216 = vmatmul.mubr.f32.gmra.mrb[0].mxu0 %v121
  %v217 = vpop.f32.mrb[0].mxu0
  %v218 = vadd.f32 0.0, %v217
  %v219 = vpop.f32.mrb[0].mxu0
  %220 = vmatprep.mubr.f32.mxu0 0.0
  %221 = vmatmul.mubr.f32.gmra.mrb[0].mxu0 %v122
  %v222 = vpop.f32.mrb[0].mxu0
  %v223 = vadd.f32 0.0, %v222
  %v224 = vpop.f32.mrb[0].mxu0
  %225 = vmatprep.mubr.f32.mxu0 0.0
  %226 = vmatmul.mubr.f32.gmra.mrb[0].mxu0 %v123
  %v227 = vpop.f32.mrb[0].mxu0
  %v228 = vadd.f32 0.0, %v227
  %v229 = vpop.f32.mrb[0].mxu0
  %230 = vmatprep.mubr.f32.mxu0 0.0
  %231 = vmatmul.mubr.f32.gmra.mrb[0].mxu0 %v124
  %v232 = vpop.f32.mrb[0].mxu0
  %v233 = vadd.f32 0.0, %v232
  %v234 = vpop.f32.mrb[0].mxu0
  %235 = vdwg.mxu0
  %v236 = vmul.f32 %v208, %v218
  %v237 = vmul.f32 %v213, %v223
  %v238 = vrsqrt.pop %v236
  %v239 = vmul.f32 %v236, %v238
  %vm240 = vcmp.eq.f32.partialorder %v236, inf
  %v241 = vsel %vm240, %v236, %v239
  %vm242 = vcmp.eq.f32.partialorder %v236, 0.0
  %v243 = vand.u32 %v236, 2147483648
  %v244 = vsel %vm242, %v243, %v241
  %v245 = vrsqrt.pop %v237
  %v246 = vmul.f32 %v237, %v245
  %vm247 = vcmp.eq.f32.partialorder %v237, inf
  %v248 = vsel %vm247, %v237, %v246
  %vm249 = vcmp.eq.f32.partialorder %v237, 0.0
  %v250 = vand.u32 %v237, 2147483648
  %v251 = vsel %vm249, %v250, %v248
  %v252 = vrcp.pop %v244
  %v253 = vmul.f32 %v228, %v252
  %v254 = vrcp.pop %v251
  %v255 = vmul.f32 %v233, %v254
  %v256 = vmax.f32 %v253, -1.0
  %v257 = vmax.f32 %v255, -1.0
  %v258 = vmin.f32 %v256, 1.0
  %v259 = vmin.f32 %v257, 1.0
  %vm260 = vcmask 261120
  %261 = vst.msk [vmem:[%s7] sm:$0xff] %vm260, %v258
  %262 = vst.msk [vmem:[%s7 + $0x8] sm:$0xff] %vm260, %v259
  %v263 = vld [vmem:[%s2] sm:$0xff]
  %v264 = vld [vmem:[%s2 + $0x8] sm:$0xff]
  %v265 = vld [vmem:[%s2 + $0x10] sm:$0xff]
  %v266 = vld [vmem:[%s2 + $0x18] sm:$0xff]
  %v267 = vld [vmem:[%s2 + $0x20] sm:$0xff]
  %v268 = vld [vmem:[%s2 + $0x28] sm:$0xff]
  %v269 = vld [vmem:[%s2 + $0x30] sm:$0xff]
  %v270 = vld [vmem:[%s2 + $0x38] sm:$0xff]
  %v271 = vld [vmem:[%s2 + $0x40] sm:$0xff]
  %v272 = vld [vmem:[%s2 + $0x48] sm:$0xff]
  %v273 = vld [vmem:[#allocation2] sm:$0xff]
  %v274 = vld [vmem:[#allocation2 + $0x8] sm:$0xff]
  %v275 = vld [vmem:[#allocation2 + $0x10] sm:$0xff]
  %v276 = vld [vmem:[#allocation2 + $0x18] sm:$0xff]
  %v277 = vld [vmem:[#allocation2 + $0x20] sm:$0xff]
  %v278 = vld [vmem:[#allocation2 + $0x28] sm:$0xff]
  %v279 = vld [vmem:[#allocation2 + $0x30] sm:$0xff]
  %v280 = vld [vmem:[#allocation2 + $0x38] sm:$0xff]
  %v281 = vld [vmem:[#allocation2 + $0x40] sm:$0xff]
  %v282 = vld [vmem:[#allocation2 + $0x48] sm:$0xff]
  %vm283 = vcmask 654336
  %v285 = vsel %vm283, %v263, 0
  %v288 = vsel %vm283, %v264, 0
  %v291 = vsel %vm283, %v265, 0
  %v294 = vsel %vm283, %v266, 0
  %v297 = vsel %vm283, %v267, 0
  %v300 = vsel %vm283, %v268, 0
  %v303 = vsel %vm283, %v269, 0
  %v306 = vsel %vm283, %v270, 0
  %v309 = vsel %vm283, %v271, 0
  %v312 = vsel %vm283, %v272, 0
  %314 = vmatprep.subr.mxu0 0.0
  %315 = vmatpush1.msra.mxu0 %v273
  %316 = vmatprep.subr.mxu0 0.0
  %317 = vmatpush1.msra.mxu0 %v274
  %318 = vmatprep.subr.mxu0 0.0
  %319 = vmatpush1.msra.mxu0 %v275
  %320 = vmatprep.subr.mxu0 0.0
  %321 = vmatpush1.msra.mxu0 %v276
  %322 = vmatprep.subr.mxu0 0.0
  %323 = vmatpush1.msra.mxu0 %v277
  %324 = vmatprep.subr.mxu0 0.0
  %325 = vmatpush1.msra.mxu0 %v278
  %326 = vmatprep.subr.mxu0 0.0
  %327 = vmatpush1.msra.mxu0 %v279
  %328 = vmatprep.subr.mxu0 0.0
  %329 = vmatpush1.msra.mxu0 %v280
  %330 = vmatprep.subr.mxu0 0.0
  %331 = vmatpush1.msra.mxu0 %v281
  %332 = vmatprep.subr.mxu0 0.0
  %333 = vmatpush1.msra.mxu0 %v282
  %334 = vmatprep.subr.mxu0 0.0
  %335 = vmatpush1.msra.mxu0 0.0
  %336 = vmatprep.subr.mxu0 0.0
  %337 = vmatpush1.msra.mxu0 0.0
  %338 = vmatprep.subr.mxu0 0.0
  %339 = vmatpush1.msra.mxu0 0.0
  %340 = vmatprep.subr.mxu0 0.0
  %341 = vmatpush1.msra.mxu0 0.0
  %342 = vmatprep.subr.mxu0 0.0
  %343 = vmatpush1.msra.mxu0 0.0
  %344 = vmatprep.subr.mxu0 0.0
  %345 = vmatpush1.msra.mxu0 0.0
  %346 = vmatprep.subr.mxu0 0.0
  %347 = vmatpush1.msra.mxu0 0.0
  %348 = vmatprep.subr.mxu0 0.0
  %349 = vmatpush1.msra.mxu0 0.0
  %350 = vmatprep.subr.mxu0 0.0
  %351 = vmatpush1.msra.mxu0 0.0
  %352 = vmatprep.subr.mxu0 0.0
  %353 = vmatpush1.msra.mxu0 0.0
  %354 = vmatprep.subr.mxu0 0.0
  %355 = vmatpush1.msra.mxu0 0.0
  %356 = vmatprep.subr.mxu0 0.0
  %357 = vmatpush1.msra.mxu0 0.0
  %358 = vmatprep.subr.mxu0 0.0
  %359 = vmatpush1.msra.mxu0 0.0
  %360 = vmatprep.subr.mxu0 0.0
  %361 = vmatpush1.msra.mxu0 0.0
  %362 = vmatprep.subr.mxu0 0.0
  %363 = vmatpush1.msra.mxu0 0.0
  %364 = vmatprep.subr.mxu0 0.0
  %365 = vmatpush1.msra.mxu0 0.0
  %366 = vmatprep.subr.mxu0 0.0
  %367 = vmatpush1.msra.mxu0 0.0
  %368 = vmatprep.subr.mxu0 0.0
  %369 = vmatpush1.msra.mxu0 0.0
  %370 = vmatprep.subr.mxu0 0.0
  %371 = vmatpush1.msra.mxu0 0.0
  %372 = vmatprep.subr.mxu0 0.0
  %373 = vmatpush1.msra.mxu0 0.0
  %374 = vmatprep.subr.mxu0 0.0
  %375 = vmatpush1.msra.mxu0 0.0
  %376 = vmatprep.subr.mxu0 0.0
  %377 = vmatpush1.msra.mxu0 0.0
  %378 = vmatprep.mubr.f32.mxu0 0.0
  %379 = vmatmul.mubr.f32.gmra.mrb[0].mxu0 %v285
  %v380 = vpop.f32.mrb[0].mxu0
  %v381 = vadd.f32 0.0, %v380
  %v382 = vpop.f32.mrb[0].mxu0
  %383 = vmatprep.mubr.f32.mxu0 0.0
  %384 = vmatmul.mubr.f32.gmra.mrb[0].mxu0 %v288
  %v385 = vpop.f32.mrb[0].mxu0
  %v386 = vadd.f32 0.0, %v385
  %v387 = vpop.f32.mrb[0].mxu0
  %388 = vmatprep.mubr.f32.mxu0 0.0
  %389 = vmatmul.mubr.f32.gmra.mrb[0].mxu0 %v291
  %v390 = vpop.f32.mrb[0].mxu0
  %v391 = vadd.f32 0.0, %v390
  %v392 = vpop.f32.mrb[0].mxu0
  %393 = vmatprep.mubr.f32.mxu0 0.0
  %394 = vmatmul.mubr.f32.gmra.mrb[0].mxu0 %v294
  %v395 = vpop.f32.mrb[0].mxu0
  %v396 = vadd.f32 0.0, %v395
  %v397 = vpop.f32.mrb[0].mxu0
  %398 = vmatprep.mubr.f32.mxu0 0.0
  %399 = vmatmul.mubr.f32.gmra.mrb[0].mxu0 %v297
  %v400 = vpop.f32.mrb[0].mxu0
  %v401 = vadd.f32 0.0, %v400
  %v402 = vpop.f32.mrb[0].mxu0
  %403 = vmatprep.mubr.f32.mxu0 0.0
  %404 = vmatmul.mubr.f32.gmra.mrb[0].mxu0 %v300
  %v405 = vpop.f32.mrb[0].mxu0
  %v406 = vadd.f32 0.0, %v405
  %v407 = vpop.f32.mrb[0].mxu0
  %408 = vmatprep.mubr.f32.mxu0 0.0
  %409 = vmatmul.mubr.f32.gmra.mrb[0].mxu0 %v303
  %v410 = vpop.f32.mrb[0].mxu0
  %v411 = vadd.f32 0.0, %v410
  %v412 = vpop.f32.mrb[0].mxu0
  %413 = vmatprep.mubr.f32.mxu0 0.0
  %414 = vmatmul.mubr.f32.gmra.mrb[0].mxu0 %v306
  %v415 = vpop.f32.mrb[0].mxu0
  %v416 = vadd.f32 0.0, %v415
  %v417 = vpop.f32.mrb[0].mxu0
  %418 = vmatprep.mubr.f32.mxu0 0.0
  %419 = vmatmul.mubr.f32.gmra.mrb[0].mxu0 %v309
  %v420 = vpop.f32.mrb[0].mxu0
  %v421 = vadd.f32 0.0, %v420
  %v422 = vpop.f32.mrb[0].mxu0
  %423 = vmatprep.mubr.f32.mxu0 0.0
  %424 = vmatmul.mubr.f32.gmra.mrb[0].mxu0 %v312
  %v425 = vpop.f32.mrb[0].mxu0
  %v426 = vadd.f32 0.0, %v425
  %v427 = vpop.f32.mrb[0].mxu0
  %428 = vdwg.mxu0
  %v429 = vld [vmem:[%s3] sm:$0xff]
  %v430 = vld [vmem:[%s3 + $0x8] sm:$0xff]
  %v431 = vld [vmem:[%s3 + $0x10] sm:$0xff]
  %v432 = vld [vmem:[%s3 + $0x18] sm:$0xff]
  %v433 = vld [vmem:[%s3 + $0x20] sm:$0xff]
  %v434 = vld [vmem:[%s3 + $0x28] sm:$0xff]
  %v435 = vld [vmem:[%s3 + $0x30] sm:$0xff]
  %v436 = vld [vmem:[%s3 + $0x38] sm:$0xff]
  %v437 = vld [vmem:[%s3 + $0x40] sm:$0xff]
  %v438 = vld [vmem:[%s3 + $0x48] sm:$0xff]
  %v439 = vld [vmem:[%s3 + $0x50] sm:$0xff]
  %v440 = vld [vmem:[%s3 + $0x58] sm:$0xff]
  %v441 = vld [vmem:[%s3 + $0x60] sm:$0xff]
  %v442 = vld [vmem:[%s3 + $0x68] sm:$0xff]
  %v443 = vld [vmem:[%s3 + $0x70] sm:$0xff]
  %v444 = vld [vmem:[%s3 + $0x78] sm:$0xff]
  %445 = vmatprep.subr.mxu0 0.0
  %446 = vmatpush1.msra.mxu0 %v429
  %447 = vmatprep.subr.mxu0 0.0
  %448 = vmatpush1.msra.mxu0 %v430
  %449 = vmatprep.subr.mxu0 0.0
  %450 = vmatpush1.msra.mxu0 %v431
  %451 = vmatprep.subr.mxu0 0.0
  %452 = vmatpush1.msra.mxu0 %v432
  %453 = vmatprep.subr.mxu0 0.0
  %454 = vmatpush1.msra.mxu0 %v433
  %455 = vmatprep.subr.mxu0 0.0
  %456 = vmatpush1.msra.mxu0 %v434
  %457 = vmatprep.subr.mxu0 0.0
  %458 = vmatpush1.msra.mxu0 %v435
  %459 = vmatprep.subr.mxu0 0.0
  %460 = vmatpush1.msra.mxu0 %v436
  %461 = vmatprep.subr.mxu0 0.0
  %462 = vmatpush1.msra.mxu0 %v437
  %463 = vmatprep.subr.mxu0 0.0
  %464 = vmatpush1.msra.mxu0 %v438
  %465 = vmatprep.subr.mxu0 0.0
  %466 = vmatpush1.msra.mxu0 %v439
  %467 = vmatprep.subr.mxu0 0.0
  %468 = vmatpush1.msra.mxu0 %v440
  %469 = vmatprep.subr.mxu0 0.0
  %470 = vmatpush1.msra.mxu0 %v441
  %471 = vmatprep.subr.mxu0 0.0
  %472 = vmatpush1.msra.mxu0 %v442
  %473 = vmatprep.subr.mxu0 0.0
  %474 = vmatpush1.msra.mxu0 %v443
  %475 = vmatprep.subr.mxu0 0.0
  %476 = vmatpush1.msra.mxu0 %v444
  %477 = vmatprep.subr.mxu0 0.0
  %478 = vmatpush1.msra.mxu0 0.0
  %479 = vmatprep.subr.mxu0 0.0
  %480 = vmatpush1.msra.mxu0 0.0
  %481 = vmatprep.subr.mxu0 0.0
  %482 = vmatpush1.msra.mxu0 0.0
  %483 = vmatprep.subr.mxu0 0.0
  %484 = vmatpush1.msra.mxu0 0.0
  %485 = vmatprep.subr.mxu0 0.0
  %486 = vmatpush1.msra.mxu0 0.0
  %487 = vmatprep.subr.mxu0 0.0
  %488 = vmatpush1.msra.mxu0 0.0
  %489 = vmatprep.subr.mxu0 0.0
  %490 = vmatpush1.msra.mxu0 0.0
  %491 = vmatprep.subr.mxu0 0.0
  %492 = vmatpush1.msra.mxu0 0.0
  %493 = vmatprep.subr.mxu0 0.0
  %494 = vmatpush1.msra.mxu0 0.0
  %495 = vmatprep.subr.mxu0 0.0
  %496 = vmatpush1.msra.mxu0 0.0
  %497 = vmatprep.subr.mxu0 0.0
  %498 = vmatpush1.msra.mxu0 0.0
  %499 = vmatprep.subr.mxu0 0.0
  %500 = vmatpush1.msra.mxu0 0.0
  %501 = vmatprep.subr.mxu0 0.0
  %502 = vmatpush1.msra.mxu0 0.0
  %503 = vmatprep.subr.mxu0 0.0
  %504 = vmatpush1.msra.mxu0 0.0
  %505 = vmatprep.subr.mxu0 0.0
  %506 = vmatpush1.msra.mxu0 0.0
  %507 = vmatprep.subr.mxu0 0.0
  %508 = vmatpush1.msra.mxu0 0.0
  %509 = vmatprep.mubr.f32.mxu0 0.0
  %510 = vmatmul.mubr.f32.gmra.mrb[0].mxu0 %v381
  %v511 = vpop.f32.mrb[0].mxu0
  %v512 = vadd.f32 0.0, %v511
  %v513 = vpop.f32.mrb[0].mxu0
  %514 = vmatprep.mubr.f32.mxu0 0.0
  %515 = vmatmul.mubr.f32.gmra.mrb[0].mxu0 %v386
  %v516 = vpop.f32.mrb[0].mxu0
  %v517 = vadd.f32 0.0, %v516
  %v518 = vpop.f32.mrb[0].mxu0
  %519 = vmatprep.mubr.f32.mxu0 0.0
  %520 = vmatmul.mubr.f32.gmra.mrb[0].mxu0 %v391
  %v521 = vpop.f32.mrb[0].mxu0
  %v522 = vadd.f32 0.0, %v521
  %v523 = vpop.f32.mrb[0].mxu0
  %524 = vmatprep.mubr.f32.mxu0 0.0
  %525 = vmatmul.mubr.f32.gmra.mrb[0].mxu0 %v396
  %v526 = vpop.f32.mrb[0].mxu0
  %v527 = vadd.f32 0.0, %v526
  %v528 = vpop.f32.mrb[0].mxu0
  %529 = vmatprep.mubr.f32.mxu0 0.0
  %530 = vmatmul.mubr.f32.gmra.mrb[0].mxu0 %v401
  %v531 = vpop.f32.mrb[0].mxu0
  %v532 = vadd.f32 0.0, %v531
  %v533 = vpop.f32.mrb[0].mxu0
  %534 = vmatprep.mubr.f32.mxu0 0.0
  %535 = vmatmul.mubr.f32.gmra.mrb[0].mxu0 %v406
  %v536 = vpop.f32.mrb[0].mxu0
  %v537 = vadd.f32 0.0, %v536
  %v538 = vpop.f32.mrb[0].mxu0
  %539 = vmatprep.mubr.f32.mxu0 0.0
  %540 = vmatmul.mubr.f32.gmra.mrb[0].mxu0 %v411
  %v541 = vpop.f32.mrb[0].mxu0
  %v542 = vadd.f32 0.0, %v541
  %v543 = vpop.f32.mrb[0].mxu0
  %544 = vmatprep.mubr.f32.mxu0 0.0
  %545 = vmatmul.mubr.f32.gmra.mrb[0].mxu0 %v416
  %v546 = vpop.f32.mrb[0].mxu0
  %v547 = vadd.f32 0.0, %v546
  %v548 = vpop.f32.mrb[0].mxu0
  %549 = vmatprep.mubr.f32.mxu0 0.0
  %550 = vmatmul.mubr.f32.gmra.mrb[0].mxu0 %v421
  %v551 = vpop.f32.mrb[0].mxu0
  %v552 = vadd.f32 0.0, %v551
  %v553 = vpop.f32.mrb[0].mxu0
  %554 = vmatprep.mubr.f32.mxu0 0.0
  %555 = vmatmul.mubr.f32.gmra.mrb[0].mxu0 %v426
  %v556 = vpop.f32.mrb[0].mxu0
  %v557 = vadd.f32 0.0, %v556
  %v558 = vpop.f32.mrb[0].mxu0
  %559 = vdwg.mxu0
  %560 = vst [vmem:[#allocation2] sm:$0xff] %v512
  %561 = vst [vmem:[#allocation2 + $0x8] sm:$0xff] %v517
  %562 = vst [vmem:[#allocation2 + $0x10] sm:$0xff] %v522
  %563 = vst [vmem:[#allocation2 + $0x18] sm:$0xff] %v527
  %564 = vst [vmem:[#allocation2 + $0x20] sm:$0xff] %v532
  %565 = vst [vmem:[#allocation2 + $0x28] sm:$0xff] %v537
  %566 = vst [vmem:[#allocation2 + $0x30] sm:$0xff] %v542
  %567 = vst [vmem:[#allocation2 + $0x38] sm:$0xff] %v547
  %568 = vst [vmem:[#allocation2 + $0x40] sm:$0xff] %v552
  %569 = vst [vmem:[#allocation2 + $0x48] sm:$0xff] %v557
  %v570 = vld [vmem:[#allocation2] sm:$0xff]
  %v571 = vld [vmem:[#allocation2 + $0x8] sm:$0xff]
  %v572 = vld [vmem:[#allocation2 + $0x10] sm:$0xff]
  %v573 = vld [vmem:[#allocation2 + $0x18] sm:$0xff]
  %v574 = vld [vmem:[#allocation2 + $0x20] sm:$0xff]
  %v575 = vld [vmem:[#allocation2 + $0x28] sm:$0xff]
  %v576 = vld [vmem:[#allocation2 + $0x30] sm:$0xff]
  %v577 = vld [vmem:[#allocation2 + $0x38] sm:$0xff]
  %v578 = vld [vmem:[#allocation2 + $0x40] sm:$0xff]
  %v579 = vld [vmem:[#allocation2 + $0x48] sm:$0xff]
  %v580 = vmul.f32 %v570, %v570
  %v581 = vmul.f32 %v571, %v571
  %v582 = vmul.f32 %v572, %v572
  %v583 = vmul.f32 %v573, %v573
  %v584 = vmul.f32 %v570, %v572
  %v585 = vmul.f32 %v571, %v573
  %v586 = vmul.f32 %v584, 2.0
  %v587 = vmul.f32 %v585, 2.0
  %v588 = vadd.f32 %v586, %v100
  %v589 = vadd.f32 %v587, %v100
  %v590 = vsub.f32 %v578, %v584
  %v591 = vsub.f32 %v579, %v585
  %v592 = vmul.f32 %v590, 2.0
  %v593 = vmul.f32 %v591, 2.0
  %v594 = vadd.f32 %v592, %v102
  %v595 = vadd.f32 %v593, %v102
  %v596 = vmul.f32 %v588, %v594
  %v597 = vmul.f32 %v589, %v595
  %v598 = vadd.f32 %v580, %v582
  %v599 = vadd.f32 %v581, %v583
  %v600 = vadd.f32 %v598, %v100
  %v601 = vadd.f32 %v599, %v100
  %v602 = vsub.f32 %v574, %v580
  %v603 = vsub.f32 %v575, %v581
  %v604 = vsub.f32 %v576, %v582
  %v605 = vsub.f32 %v577, %v583
  %v606 = vadd.f32 %v602, %v604
  %v607 = vadd.f32 %v603, %v605
  %v608 = vadd.f32 %v606, %v102
  %v609 = vadd.f32 %v607, %v102
  %v610 = vmul.f32 %v600, %v608
  %v611 = vmul.f32 %v601, %v609
  %v612 = vrcp.pop %v610
  %v613 = vmul.f32 %v596, %v612
  %v614 = vrcp.pop %v611
  %v615 = vmul.f32 %v597, %v614
  %v616 = vld [vmem:[%s5] sm:$0xff]
  %v617 = vld [vmem:[%s5 + $0x8] sm:$0xff]
  %v618 = vmul.f32 %v613, %v616
  %v619 = vmul.f32 %v615, %v617
  %620 = vadd.xlane.f32.xlu0 %v618
  %v621 = vpop.xlane.xlu0 %620
  %622 = vadd.xlane.f32.xlu0 %v619
  %v623 = vpop.xlane.xlu0 %622
  %v624 = vadd.f32 %v621, %v623
  %v625 = vrot.slane %v624, 4
  %v626 = vadd.f32 %v624, %v625
  %v627 = vrot.slane %v626, 2
  %v628 = vadd.f32 %v626, %v627
  %v629 = vrot.slane %v628, 1
  %v630 = vadd.f32 %v628, %v629
  %v631 = vlaneseq
  %v632 = vand.u32 %v631, 127
  %vm633 = vcmp.eq.s32.totalorder %v632, 0
  %vm634 = vcmp.eq.s32.totalorder %v632, 1
  %v635 = vsel %vm634, %v630, 0.0
  %v636 = vsel %vm633, %v51, %v635
  %637 = vst [vmem:[%s6] sm:$0x1] %v636
  // Predicated region
  $region26: #{_lambda_.1} parent=0 // pred_check
    _
  $region27: #{_lambda_.1} parent=0 // pred_check_branch
    %639 = sbr.rel (0) target = $region29
  $region28: #{_lambda_.1} parent=0 // pred_region
    _
  $region29: #{_lambda_.1} parent=0 // pred_fallthru
    _
  // Predicated region
  $region30: #{_lambda_.1} parent=0 // pred_check
    _
  $region31: #{_lambda_.1} parent=0 // pred_check_branch
    %641 = sbr.rel (0) target = $region33
  $region32: #{_lambda_.1} parent=0 // pred_region
    _
  $region33: #{_lambda_.1} parent=0 // pred_fallthru
    _
  // Predicated region
  $region34: #{_lambda_.1} parent=0 // pred_check
    _
  $region35: #{_lambda_.1} parent=0 // pred_check_branch
    %643 = sbr.rel (0) target = $region37
  $region36: #{_lambda_.1} parent=0 // pred_region
    _
  $region37: #{_lambda_.1} parent=0 // pred_fallthru
    _
  // Predicated region
  $region38: #{_lambda_.1} parent=0 // pred_check
    _
  $region39: #{_lambda_.1} parent=0 // pred_check_branch
    %645 = sbr.rel (0) target = $region41
  $region40: #{_lambda_.1} parent=0 // pred_region
    _
  $region41: #{_lambda_.1} parent=0 // pred_fallthru
    _

</llo_original>
